<compile_context>
chip_gen: v5e
topology: v5e:2x2
jax: 0.10.0
libtpu: 0.0.40
codegen_flags: <defaults>
</compile_context>

<pallas_src>
import math

import jax
import jax.numpy as jnp
from jax import lax
from jax.experimental import pallas as pl
from jax.experimental.pallas import tpu as pltpu

# ----------------------- config (small synthetic shapes) -----------------------
EMB = 32                       # embedding_size
N_USERS = 8
N_ITEMS = 12
N_U = N_USERS + 1              # +1 padding row (padding_idx=0) -> 9
N_I = N_ITEMS + 1              # 13
N_NODES = N_U + N_I            # 22
N_PAD = ((N_NODES + 7) // 8) * 8   # 24: sublane-aligned node dimension
BEHAVIORS = ("view", "buy")
N_BEH = len(BEHAVIORS)
LAYERS = (1, 2)                # GCN layers per behavior
TOTAL_LAYERS = sum(LAYERS)
BATCH = 4
REG_WEIGHT = 1e-4
BEHAVIOR_WEIGHTS = (1.0, 1.0)  # `weights` is an undefined global in the torch code
CL_TEMPERATURE = 0.1
N_EDGES = 30

_VMEM = pl.BlockSpec(memory_space=pltpu.MemorySpace.VMEM)
_SMEM = pl.BlockSpec(memory_space=pltpu.MemorySpace.SMEM)


# ------------------------------- fused Pallas kernel ----------------------------
def _cbfricl_kernel(scal_ref, idx_ref, total_ref, a_ref, w_ref, b_ref,
                    loss_ref, emb_ref):
    """One launch for the whole CBFRICL forward.

    scal_ref : SMEM f32    [N_BEH + 1]              behavior weights + reg_weight
    idx_ref  : VMEM int32  [N_BEH, 3*BATCH, 1]      global node row ids (u, pos, neg)
    total_ref: VMEM f32    [N_PAD, EMB]             cat(user_emb, item_emb), zero-padded
    a_ref    : VMEM bf16   [N_BEH, N_PAD, N_PAD]    normalized adjacency per behavior
    w_ref    : VMEM bf16   [TOTAL_LAYERS, EMB, EMB]
    b_ref    : VMEM f32    [TOTAL_LAYERS, EMB]
    loss_ref : VMEM f32    [1, 1]
    emb_ref  : VMEM f32    [N_BEH, N_PAD, EMB]      all_embeddings per behavior
    """
    total = total_ref[...]                                    # f32 [N_PAD, EMB]

    # ---- EmbLoss on the raw embedding tables (rows of `total` pre-propagation).
    # Masked row-split (padded rows are zero -> contribute nothing).
    sq_rows = jnp.sum(total * total, axis=-1, keepdims=True)  # [N_PAD, 1]
    node_ids = lax.broadcasted_iota(jnp.int32, (N_PAD, 1), 0)
    is_user = (node_ids < N_U).astype(jnp.float32)
    emb_reg = (jnp.sqrt(jnp.sum(sq_rows * is_user))
               + jnp.sqrt(jnp.sum(sq_rows * (1.0 - is_user))))
    total_loss = scal_ref[N_BEH] * (emb_reg / N_I)            # reg_weight * EmbLoss

    row_ids = lax.broadcasted_iota(jnp.int32, (1, N_PAD), 1)  # one-hot lane selector
    eps = 1e-8                                                # torch cosine_similarity eps

    li = 0
    for bi, n_layers in enumerate(LAYERS):
        # ---------------- GCN propagate for this behavior (bf16 MXU, f32 accum)
        a = a_ref[bi]                                         # bf16 [N_PAD, N_PAD]
        layer = total
        for _ in range(n_layers):
            xw = jnp.dot(layer.astype(jnp.bfloat16), w_ref[li],
                         preferred_element_type=jnp.float32)
            agg = jnp.dot(a, xw.astype(jnp.bfloat16),
                          preferred_element_type=jnp.float32)
            layer = agg + b_ref[pl.ds(li, 1), :]              # GCNConv bias
            li += 1
        nrm = jnp.sqrt(jnp.sum(layer * layer, axis=-1, keepdims=True))
        total = layer / jnp.maximum(nrm, 1e-12) + total       # F.normalize + residual
        emb_ref[bi] = total                                   # all_embeddings[behavior]

        # ---------------- in-kernel gather of u / pos / neg rows for this behavior
        # single vectorized one-hot build + selection matmul (exact for 0/1 rows)
        idx_col = idx_ref[bi]                                 # int32 [3*BATCH, 1]
        sel = (idx_col == row_ids).astype(jnp.float32)        # [3*BATCH, N_PAD]
        feats = jnp.dot(sel, total, preferred_element_type=jnp.float32)
        u = feats[0:BATCH, :]                                 # [BATCH, EMB]
        p = feats[BATCH:2 * BATCH, :]
        n = feats[2 * BATCH:3 * BATCH, :]

        # ---------------- InfoNCE (cosine sims, T=0.1, labels == 0)
        uu = jnp.sum(u * u, axis=-1, keepdims=True)
        pp = jnp.sum(p * p, axis=-1, keepdims=True)
        nn_sq = jnp.sum(n * n, axis=-1, keepdims=True)
        up = jnp.sum(u * p, axis=-1, keepdims=True)           # also BPR positive score
        un = jnp.sum(u * n, axis=-1, keepdims=True)           # also BPR negative score
        # matches torch: w12 / sqrt(clamp_min(w1*w2, eps^2))
        pos_sim = up / jnp.sqrt(jnp.maximum(uu * pp, eps * eps))
        neg_sim = un / jnp.sqrt(jnp.maximum(uu * nn_sq, eps * eps))
        lp = pos_sim / CL_TEMPERATURE
        ln = neg_sim / CL_TEMPERATURE
        m = jnp.maximum(lp, ln)
        lse = m + jnp.log(jnp.exp(lp - m) + jnp.exp(ln - m))
        cl_loss = jnp.mean(lse - lp)                          # cross-entropy, labels == 0

        # ---------------- BPR on raw dot-product scores
        sig = 1.0 / (1.0 + jnp.exp(-(up - un)))
        bpr_loss = -jnp.mean(jnp.log(1e-10 + sig))            # BPRLoss(gamma=1e-10)

        total_loss = total_loss + scal_ref[bi] * bpr_loss + cl_loss

    loss_ref[...] = jnp.reshape(total_loss, (1, 1))


def cbfricl_forward(batch_data, user_w, item_w, a_stack, w_stack, b_stack, scal):
    """JAX glue: pad the node axis, build global row ids, invoke the fused kernel."""
    total0 = jnp.zeros((N_PAD, EMB), jnp.float32)
    total0 = total0.at[:N_NODES].set(jnp.concatenate([user_w, item_w], axis=0))

    # Global node row indices per behavior: [u_0..u_{B-1}, pos.., neg..] (+N_U offset
    # for item rows), shaped [N_BEH, 3*BATCH, 1] for a single in-kernel compare.
    bd = batch_data.astype(jnp.int32)
    users = bd[:, :, 0]                                       # [BATCH, N_BEH]
    pos = bd[:, :, 1] + N_U
    neg = bd[:, :, 2] + N_U
    sel_idx = jnp.stack(
        [jnp.concatenate([users[:, b], pos[:, b], neg[:, b]]) for b in range(N_BEH)],
        axis=0)[..., None]                                    # [N_BEH, 3*BATCH, 1]

    loss, all_emb = pl.pallas_call(
        _cbfricl_kernel,
        out_shape=(
            jax.ShapeDtypeStruct((1, 1), jnp.float32),
            jax.ShapeDtypeStruct((N_BEH, N_PAD, EMB), jnp.float32),
        ),
        in_specs=[_SMEM, _VMEM, _VMEM, _VMEM, _VMEM, _VMEM],
        out_specs=(_VMEM, _VMEM),
    )(scal, sel_idx, total0, a_stack, w_stack, b_stack)

    return loss[0, 0], all_emb[:, :N_NODES, :]


# ---------------------------------- init helpers ---------------------------------
def xavier_uniform(key, shape):
    fan_in, fan_out = shape
    bound = math.sqrt(6.0 / (fan_in + fan_out))
    return jax.random.uniform(key, shape, jnp.float32, -bound, bound)


def build_norm_adj(key, n_edges):
    """Dense symmetric-normalized adjacency (padded to N_PAD) from random edges."""
    ku, ki = jax.random.split(key)
    u = jax.random.randint(ku, (n_edges,), 1, N_U)            # user nodes 1..N_USERS
    it = jax.random.randint(ki, (n_edges,), 1, N_I) + N_U     # item nodes (offset)
    a = jnp.zeros((N_PAD, N_PAD), jnp.float32)
    a = a.at[u, it].set(1.0)
    a = a.at[it, u].set(1.0)
    deg = jnp.sum(a, axis=1)
    dinv = jnp.where(deg > 0, 1.0 / jnp.sqrt(jnp.maximum(deg, 1.0)), 0.0)
    return dinv[:, None] * a * dinv[None, :]


# ------------------------------------ main ---------------------------------------
if __name__ == "__main__":
    key = jax.random.PRNGKey(0)
    k_ue, k_ie, k_adj, k_gcn, k_batch = jax.random.split(key, 5)

    # Embedding tables (xavier-uniform, padding row 0 zeroed).
    user_w = xavier_uniform(k_ue, (N_U, EMB)).at[0].set(0.0)
    item_w = xavier_uniform(k_ie, (N_I, EMB)).at[0].set(0.0)

    # Per-behavior normalized adjacency (densified edge_index), stacked, bf16 for MXU.
    adj_keys = jax.random.split(k_adj, N_BEH)
    a_stack = jnp.stack([build_norm_adj(adj_keys[i], N_EDGES)
                         for i in range(N_BEH)]).astype(jnp.bfloat16)

    # Stacked GCNConv parameters: W [EMB,EMB] (glorot, bf16), b [EMB] (zeros, f32).
    ws, bs = [], []
    gk = k_gcn
    for n_layers in LAYERS:
        for _ in range(n_layers):
            gk, sub = jax.random.split(gk)
            ws.append(xavier_uniform(sub, (EMB, EMB)))
            bs.append(jnp.zeros((EMB,), jnp.float32))
    w_stack = jnp.stack(ws).astype(jnp.bfloat16)              # [TOTAL_LAYERS, EMB, EMB]
    b_stack = jnp.stack(bs)                                   # [TOTAL_LAYERS, EMB]

    # Behavior loss weights + reg_weight as one SMEM scalar vector (no recompiles).
    scal = jnp.asarray(list(BEHAVIOR_WEIGHTS) + [REG_WEIGHT], jnp.float32)

    # batch_data: [BATCH, n_behaviors, 3] = (user, pos_item, neg_item)
    kb_u, kb_i = jax.random.split(k_batch)
    users = jax.random.randint(kb_u, (BATCH, N_BEH, 1), 1, N_U)
    items = jax.random.randint(kb_i, (BATCH, N_BEH, 2), 1, N_I)
    batch_data = jnp.concatenate([users, items], axis=-1).astype(jnp.int32)

    loss, all_emb = cbfricl_forward(batch_data, user_w, item_w,
                                    a_stack, w_stack, b_stack, scal)
    loss = jax.block_until_ready(loss)
    jax.block_until_ready(all_emb)
    assert jnp.isfinite(loss), f"non-finite loss: {loss}"
    assert bool(jnp.all(jnp.isfinite(all_emb))), "non-finite embeddings"
    print("KERNEL_OK")
</pallas_src>

<mosaic_0001>
module attributes {stable_mosaic.version = 11 : i64} {
  func.func @_cbfricl_kernel(%arg0: memref<3xf32, #tpu.memory_space<smem>>, %arg1: memref<2x12x1xi32, #tpu.memory_space<vmem>>, %arg2: memref<24x32xf32, #tpu.memory_space<vmem>>, %arg3: memref<2x24x24xbf16, #tpu.memory_space<vmem>>, %arg4: memref<3x32x32xbf16, #tpu.memory_space<vmem>>, %arg5: memref<3x32xf32, #tpu.memory_space<vmem>>, %arg6: memref<1x1xf32, #tpu.memory_space<vmem>>, %arg7: memref<2x24x32xf32, #tpu.memory_space<vmem>>) attributes {dimension_semantics = [], scalar_prefetch = 0 : i64, scratch_operands = 0 : i64, tpu.core_type = #tpu.core_type<tc>} {
    %c0 = arith.constant 0 : index
    %c0_0 = arith.constant 0 : index
    %0 = vector.load %arg2[%c0, %c0_0] : memref<24x32xf32, #tpu.memory_space<vmem>>, vector<24x32xf32>
    %1 = arith.mulf %0, %0 : vector<24x32xf32>
    %cst = arith.constant dense<0.000000e+00> : vector<24xf32>
    %2 = vector.multi_reduction <add>, %1, %cst [1] : vector<24x32xf32> to vector<24xf32>
    %3 = vector.shape_cast %2 : vector<24xf32> to vector<24x1xf32>
    %4 = tpu.iota {dimensions = array<i32: 0>} : vector<24x1xi32>
    %c9_i32 = arith.constant 9 : i32
    %5 = vector.broadcast %c9_i32 : i32 to vector<24x1xi32>
    %6 = arith.cmpi slt, %4, %5 : vector<24x1xi32>
    %7 = arith.extui %6 : vector<24x1xi1> to vector<24x1xi32>
    %8 = arith.sitofp %7 : vector<24x1xi32> to vector<24x1xf32>
    %9 = arith.mulf %3, %8 : vector<24x1xf32>
    %10 = vector.shape_cast %9 : vector<24x1xf32> to vector<1x24x1xf32>
    %cst_1 = arith.constant dense<0.000000e+00> : vector<1xf32>
    %11 = vector.multi_reduction <add>, %10, %cst_1 [1, 2] : vector<1x24x1xf32> to vector<1xf32>
    %12 = vector.shape_cast %11 : vector<1xf32> to vector<1x1x1xf32>
    %13 = vector.extract %12[0, 0, 0] : f32 from vector<1x1x1xf32>
    %14 = math.sqrt %13 : f32
    %cst_2 = arith.constant 1.000000e+00 : f32
    %15 = vector.broadcast %cst_2 : f32 to vector<24x1xf32>
    %16 = arith.subf %15, %8 : vector<24x1xf32>
    %17 = arith.mulf %3, %16 : vector<24x1xf32>
    %18 = vector.shape_cast %17 : vector<24x1xf32> to vector<1x24x1xf32>
    %cst_3 = arith.constant dense<0.000000e+00> : vector<1xf32>
    %19 = vector.multi_reduction <add>, %18, %cst_3 [1, 2] : vector<1x24x1xf32> to vector<1xf32>
    %20 = vector.shape_cast %19 : vector<1xf32> to vector<1x1x1xf32>
    %21 = vector.extract %20[0, 0, 0] : f32 from vector<1x1x1xf32>
    %22 = math.sqrt %21 : f32
    %23 = arith.addf %14, %22 : f32
    %c2 = arith.constant 2 : index
    %24 = memref.load %arg0[%c2] : memref<3xf32, #tpu.memory_space<smem>>
    %cst_4 = arith.constant 1.300000e+01 : f32
    %25 = arith.divf %23, %cst_4 : f32
    %26 = arith.mulf %24, %25 : f32
    %27 = tpu.iota {dimensions = array<i32: 1>} : vector<1x24xi32>
    %c0_5 = arith.constant 0 : index
    %c0_6 = arith.constant 0 : index
    %c0_7 = arith.constant 0 : index
    %28 = vector.load %arg3[%c0_5, %c0_6, %c0_7] : memref<2x24x24xbf16, #tpu.memory_space<vmem>>, vector<1x24x24xbf16>
    %29 = vector.shape_cast %28 : vector<1x24x24xbf16> to vector<24x24xbf16>
    %30 = arith.truncf %0 : vector<24x32xf32> to vector<24x32xbf16>
    %c0_8 = arith.constant 0 : index
    %c0_9 = arith.constant 0 : index
    %c0_10 = arith.constant 0 : index
    %31 = vector.load %arg4[%c0_8, %c0_9, %c0_10] : memref<3x32x32xbf16, #tpu.memory_space<vmem>>, vector<1x32x32xbf16>
    %32 = vector.shape_cast %31 : vector<1x32x32xbf16> to vector<32x32xbf16>
    %cst_11 = arith.constant dense<0.000000e+00> : vector<24x32xf32>
    %33 = tpu.matmul %30, %32, %cst_11 {dimension_numbers = #tpu.dot_dimension_numbers<[1], [0], [0], [1], [0, 0, 1, 1], [], []>} : vector<24x32xbf16>, vector<32x32xbf16>, vector<24x32xf32> -> vector<24x32xf32>
    %34 = arith.truncf %33 : vector<24x32xf32> to vector<24x32xbf16>
    %cst_12 = arith.constant dense<0.000000e+00> : vector<24x32xf32>
    %35 = tpu.matmul %29, %34, %cst_12 {dimension_numbers = #tpu.dot_dimension_numbers<[1], [0], [0], [1], [0, 0, 1, 1], [], []>} : vector<24x24xbf16>, vector<24x32xbf16>, vector<24x32xf32> -> vector<24x32xf32>
    %c0_13 = arith.constant 0 : index
    %c0_14 = arith.constant 0 : index
    %36 = vector.load %arg5[%c0_13, %c0_14] : memref<3x32xf32, #tpu.memory_space<vmem>>, vector<1x32xf32>
    %37 = vector.broadcast %36 : vector<1x32xf32> to vector<24x32xf32>
    %38 = arith.addf %35, %37 : vector<24x32xf32>
    %39 = arith.mulf %38, %38 : vector<24x32xf32>
    %cst_15 = arith.constant dense<0.000000e+00> : vector<24xf32>
    %40 = vector.multi_reduction <add>, %39, %cst_15 [1] : vector<24x32xf32> to vector<24xf32>
    %41 = vector.shape_cast %40 : vector<24xf32> to vector<24x1xf32>
    %42 = math.sqrt %41 : vector<24x1xf32>
    %cst_16 = arith.constant 9.99999996E-13 : f32
    %43 = vector.broadcast %cst_16 : f32 to vector<24x1xf32>
    %44 = arith.maximumf %42, %43 : vector<24x1xf32>
    %45 = vector.broadcast %44 : vector<24x1xf32> to vector<24x32xf32>
    %46 = arith.divf %38, %45 : vector<24x32xf32>
    %47 = arith.addf %46, %0 : vector<24x32xf32>
    %c0_17 = arith.constant 0 : index
    %c0_18 = arith.constant 0 : index
    %c0_19 = arith.constant 0 : index
    %48 = vector.load %arg7[%c0_17, %c0_18, %c0_19] : memref<2x24x32xf32, #tpu.memory_space<vmem>>, vector<1x24x32xf32>
    %49 = vector.shape_cast %48 : vector<1x24x32xf32> to vector<24x32xf32>
    %50 = vector.shape_cast %47 : vector<24x32xf32> to vector<1x24x32xf32>
    tpu.vector_store %arg7[%c0_17, %c0_18, %c0_19], %50 {strides = array<i32>} : memref<2x24x32xf32, #tpu.memory_space<vmem>>, vector<1x24x32xf32>,
    %c0_20 = arith.constant 0 : index
    %c0_21 = arith.constant 0 : index
    %c0_22 = arith.constant 0 : index
    %51 = vector.load %arg1[%c0_20, %c0_21, %c0_22] : memref<2x12x1xi32, #tpu.memory_space<vmem>>, vector<1x12x1xi32>
    %52 = vector.shape_cast %51 : vector<1x12x1xi32> to vector<12x1xi32>
    %53 = vector.broadcast %52 : vector<12x1xi32> to vector<12x24xi32>
    %54 = vector.broadcast %27 : vector<1x24xi32> to vector<12x24xi32>
    %55 = arith.cmpi eq, %53, %54 : vector<12x24xi32>
    %56 = arith.extui %55 : vector<12x24xi1> to vector<12x24xi32>
    %57 = arith.sitofp %56 : vector<12x24xi32> to vector<12x24xf32>
    %cst_23 = arith.constant dense<0.000000e+00> : vector<12x32xf32>
    %58 = tpu.matmul %57, %47, %cst_23 {dimension_numbers = #tpu.dot_dimension_numbers<[1], [0], [0], [1], [0, 0, 1, 1], [], []>} : vector<12x24xf32>, vector<24x32xf32>, vector<12x32xf32> -> vector<12x32xf32>
    %59 = vector.extract_strided_slice %58 {offsets = [0, 0], sizes = [4, 32], strides = [1, 1]} : vector<12x32xf32> to vector<4x32xf32>
    %60 = vector.extract_strided_slice %58 {offsets = [4, 0], sizes = [4, 32], strides = [1, 1]} : vector<12x32xf32> to vector<4x32xf32>
    %61 = vector.extract_strided_slice %58 {offsets = [8, 0], sizes = [4, 32], strides = [1, 1]} : vector<12x32xf32> to vector<4x32xf32>
    %62 = arith.mulf %59, %59 : vector<4x32xf32>
    %cst_24 = arith.constant dense<0.000000e+00> : vector<4xf32>
    %63 = vector.multi_reduction <add>, %62, %cst_24 [1] : vector<4x32xf32> to vector<4xf32>
    %64 = vector.shape_cast %63 : vector<4xf32> to vector<4x1xf32>
    %65 = arith.mulf %60, %60 : vector<4x32xf32>
    %cst_25 = arith.constant dense<0.000000e+00> : vector<4xf32>
    %66 = vector.multi_reduction <add>, %65, %cst_25 [1] : vector<4x32xf32> to vector<4xf32>
    %67 = vector.shape_cast %66 : vector<4xf32> to vector<4x1xf32>
    %68 = arith.mulf %61, %61 : vector<4x32xf32>
    %cst_26 = arith.constant dense<0.000000e+00> : vector<4xf32>
    %69 = vector.multi_reduction <add>, %68, %cst_26 [1] : vector<4x32xf32> to vector<4xf32>
    %70 = vector.shape_cast %69 : vector<4xf32> to vector<4x1xf32>
    %71 = arith.mulf %59, %60 : vector<4x32xf32>
    %cst_27 = arith.constant dense<0.000000e+00> : vector<4xf32>
    %72 = vector.multi_reduction <add>, %71, %cst_27 [1] : vector<4x32xf32> to vector<4xf32>
    %73 = vector.shape_cast %72 : vector<4xf32> to vector<4x1xf32>
    %74 = arith.mulf %59, %61 : vector<4x32xf32>
    %cst_28 = arith.constant dense<0.000000e+00> : vector<4xf32>
    %75 = vector.multi_reduction <add>, %74, %cst_28 [1] : vector<4x32xf32> to vector<4xf32>
    %76 = vector.shape_cast %75 : vector<4xf32> to vector<4x1xf32>
    %77 = arith.mulf %64, %67 : vector<4x1xf32>
    %cst_29 = arith.constant 1.000000e-16 : f32
    %78 = vector.broadcast %cst_29 : f32 to vector<4x1xf32>
    %79 = arith.maximumf %77, %78 : vector<4x1xf32>
    %80 = math.sqrt %79 : vector<4x1xf32>
    %81 = arith.divf %73, %80 : vector<4x1xf32>
    %82 = arith.mulf %64, %70 : vector<4x1xf32>
    %cst_30 = arith.constant 1.000000e-16 : f32
    %83 = vector.broadcast %cst_30 : f32 to vector<4x1xf32>
    %84 = arith.maximumf %82, %83 : vector<4x1xf32>
    %85 = math.sqrt %84 : vector<4x1xf32>
    %86 = arith.divf %76, %85 : vector<4x1xf32>
    %cst_31 = arith.constant 1.000000e-01 : f32
    %87 = vector.broadcast %cst_31 : f32 to vector<4x1xf32>
    %88 = arith.divf %81, %87 : vector<4x1xf32>
    %cst_32 = arith.constant 1.000000e-01 : f32
    %89 = vector.broadcast %cst_32 : f32 to vector<4x1xf32>
    %90 = arith.divf %86, %89 : vector<4x1xf32>
    %91 = arith.maximumf %88, %90 : vector<4x1xf32>
    %92 = arith.subf %88, %91 : vector<4x1xf32>
    %93 = math.exp %92 : vector<4x1xf32>
    %94 = arith.subf %90, %91 : vector<4x1xf32>
    %95 = math.exp %94 : vector<4x1xf32>
    %96 = arith.addf %93, %95 : vector<4x1xf32>
    %97 = math.log %96 : vector<4x1xf32>
    %98 = arith.addf %91, %97 : vector<4x1xf32>
    %99 = arith.subf %98, %88 : vector<4x1xf32>
    %100 = vector.shape_cast %99 : vector<4x1xf32> to vector<1x4x1xf32>
    %cst_33 = arith.constant dense<0.000000e+00> : vector<1xf32>
    %101 = vector.multi_reduction <add>, %100, %cst_33 [1, 2] : vector<1x4x1xf32> to vector<1xf32>
    %102 = vector.shape_cast %101 : vector<1xf32> to vector<1x1x1xf32>
    %103 = vector.extract %102[0, 0, 0] : f32 from vector<1x1x1xf32>
    %cst_34 = arith.constant 4.000000e+00 : f32
    %104 = arith.divf %103, %cst_34 : f32
    %105 = arith.subf %73, %76 : vector<4x1xf32>
    %cst_35 = arith.constant 0.000000e+00 : f32
    %106 = vector.broadcast %cst_35 : f32 to vector<4x1xf32>
    %107 = arith.subf %106, %105 : vector<4x1xf32>
    %108 = math.exp %107 : vector<4x1xf32>
    %cst_36 = arith.constant 1.000000e+00 : f32
    %109 = vector.broadcast %cst_36 : f32 to vector<4x1xf32>
    %110 = arith.addf %109, %108 : vector<4x1xf32>
    %cst_37 = arith.constant 1.000000e+00 : f32
    %111 = vector.broadcast %cst_37 : f32 to vector<4x1xf32>
    %112 = arith.divf %111, %110 : vector<4x1xf32>
    %cst_38 = arith.constant 1.000000e-10 : f32
    %113 = vector.broadcast %cst_38 : f32 to vector<4x1xf32>
    %114 = arith.addf %113, %112 : vector<4x1xf32>
    %115 = math.log %114 : vector<4x1xf32>
    %116 = vector.shape_cast %115 : vector<4x1xf32> to vector<1x4x1xf32>
    %cst_39 = arith.constant dense<0.000000e+00> : vector<1xf32>
    %117 = vector.multi_reduction <add>, %116, %cst_39 [1, 2] : vector<1x4x1xf32> to vector<1xf32>
    %118 = vector.shape_cast %117 : vector<1xf32> to vector<1x1x1xf32>
    %119 = vector.extract %118[0, 0, 0] : f32 from vector<1x1x1xf32>
    %cst_40 = arith.constant 4.000000e+00 : f32
    %120 = arith.divf %119, %cst_40 : f32
    %cst_41 = arith.constant 0.000000e+00 : f32
    %121 = arith.subf %cst_41, %120 : f32
    %c0_42 = arith.constant 0 : index
    %122 = memref.load %arg0[%c0_42] : memref<3xf32, #tpu.memory_space<smem>>
    %123 = arith.mulf %122, %121 : f32
    %124 = arith.addf %26, %123 : f32
    %125 = arith.addf %124, %104 : f32
    %c1 = arith.constant 1 : index
    %c0_43 = arith.constant 0 : index
    %c0_44 = arith.constant 0 : index
    %126 = vector.load %arg3[%c1, %c0_43, %c0_44] : memref<2x24x24xbf16, #tpu.memory_space<vmem>>, vector<1x24x24xbf16>
    %127 = vector.shape_cast %126 : vector<1x24x24xbf16> to vector<24x24xbf16>
    %128 = arith.truncf %47 : vector<24x32xf32> to vector<24x32xbf16>
    %c1_45 = arith.constant 1 : index
    %c0_46 = arith.constant 0 : index
    %c0_47 = arith.constant 0 : index
    %129 = vector.load %arg4[%c1_45, %c0_46, %c0_47] : memref<3x32x32xbf16, #tpu.memory_space<vmem>>, vector<1x32x32xbf16>
    %130 = vector.shape_cast %129 : vector<1x32x32xbf16> to vector<32x32xbf16>
    %cst_48 = arith.constant dense<0.000000e+00> : vector<24x32xf32>
    %131 = tpu.matmul %128, %130, %cst_48 {dimension_numbers = #tpu.dot_dimension_numbers<[1], [0], [0], [1], [0, 0, 1, 1], [], []>} : vector<24x32xbf16>, vector<32x32xbf16>, vector<24x32xf32> -> vector<24x32xf32>
    %132 = arith.truncf %131 : vector<24x32xf32> to vector<24x32xbf16>
    %cst_49 = arith.constant dense<0.000000e+00> : vector<24x32xf32>
    %133 = tpu.matmul %127, %132, %cst_49 {dimension_numbers = #tpu.dot_dimension_numbers<[1], [0], [0], [1], [0, 0, 1, 1], [], []>} : vector<24x24xbf16>, vector<24x32xbf16>, vector<24x32xf32> -> vector<24x32xf32>
    %c1_50 = arith.constant 1 : index
    %c0_51 = arith.constant 0 : index
    %134 = vector.load %arg5[%c1_50, %c0_51] : memref<3x32xf32, #tpu.memory_space<vmem>>, vector<1x32xf32>
    %135 = vector.broadcast %134 : vector<1x32xf32> to vector<24x32xf32>
    %136 = arith.addf %133, %135 : vector<24x32xf32>
    %137 = arith.truncf %136 : vector<24x32xf32> to vector<24x32xbf16>
    %c2_52 = arith.constant 2 : index
    %c0_53 = arith.constant 0 : index
    %c0_54 = arith.constant 0 : index
    %138 = vector.load %arg4[%c2_52, %c0_53, %c0_54] : memref<3x32x32xbf16, #tpu.memory_space<vmem>>, vector<1x32x32xbf16>
    %139 = vector.shape_cast %138 : vector<1x32x32xbf16> to vector<32x32xbf16>
    %cst_55 = arith.constant dense<0.000000e+00> : vector<24x32xf32>
    %140 = tpu.matmul %137, %139, %cst_55 {dimension_numbers = #tpu.dot_dimension_numbers<[1], [0], [0], [1], [0, 0, 1, 1], [], []>} : vector<24x32xbf16>, vector<32x32xbf16>, vector<24x32xf32> -> vector<24x32xf32>
    %141 = arith.truncf %140 : vector<24x32xf32> to vector<24x32xbf16>
    %cst_56 = arith.constant dense<0.000000e+00> : vector<24x32xf32>
    %142 = tpu.matmul %127, %141, %cst_56 {dimension_numbers = #tpu.dot_dimension_numbers<[1], [0], [0], [1], [0, 0, 1, 1], [], []>} : vector<24x24xbf16>, vector<24x32xbf16>, vector<24x32xf32> -> vector<24x32xf32>
    %c2_57 = arith.constant 2 : index
    %c0_58 = arith.constant 0 : index
    %143 = vector.load %arg5[%c2_57, %c0_58] : memref<3x32xf32, #tpu.memory_space<vmem>>, vector<1x32xf32>
    %144 = vector.broadcast %143 : vector<1x32xf32> to vector<24x32xf32>
    %145 = arith.addf %142, %144 : vector<24x32xf32>
    %146 = arith.mulf %145, %145 : vector<24x32xf32>
    %cst_59 = arith.constant dense<0.000000e+00> : vector<24xf32>
    %147 = vector.multi_reduction <add>, %146, %cst_59 [1] : vector<24x32xf32> to vector<24xf32>
    %148 = vector.shape_cast %147 : vector<24xf32> to vector<24x1xf32>
    %149 = math.sqrt %148 : vector<24x1xf32>
    %cst_60 = arith.constant 9.99999996E-13 : f32
    %150 = vector.broadcast %cst_60 : f32 to vector<24x1xf32>
    %151 = arith.maximumf %149, %150 : vector<24x1xf32>
    %152 = vector.broadcast %151 : vector<24x1xf32> to vector<24x32xf32>
    %153 = arith.divf %145, %152 : vector<24x32xf32>
    %154 = arith.addf %153, %47 : vector<24x32xf32>
    %c1_61 = arith.constant 1 : index
    %c0_62 = arith.constant 0 : index
    %c0_63 = arith.constant 0 : index
    %155 = vector.load %arg7[%c1_61, %c0_62, %c0_63] : memref<2x24x32xf32, #tpu.memory_space<vmem>>, vector<1x24x32xf32>
    %156 = vector.shape_cast %155 : vector<1x24x32xf32> to vector<24x32xf32>
    %157 = vector.shape_cast %154 : vector<24x32xf32> to vector<1x24x32xf32>
    tpu.vector_store %arg7[%c1_61, %c0_62, %c0_63], %157 {strides = array<i32>} : memref<2x24x32xf32, #tpu.memory_space<vmem>>, vector<1x24x32xf32>,
    %c1_64 = arith.constant 1 : index
    %c0_65 = arith.constant 0 : index
    %c0_66 = arith.constant 0 : index
    %158 = vector.load %arg1[%c1_64, %c0_65, %c0_66] : memref<2x12x1xi32, #tpu.memory_space<vmem>>, vector<1x12x1xi32>
    %159 = vector.shape_cast %158 : vector<1x12x1xi32> to vector<12x1xi32>
    %160 = vector.broadcast %159 : vector<12x1xi32> to vector<12x24xi32>
    %161 = vector.broadcast %27 : vector<1x24xi32> to vector<12x24xi32>
    %162 = arith.cmpi eq, %160, %161 : vector<12x24xi32>
    %163 = arith.extui %162 : vector<12x24xi1> to vector<12x24xi32>
    %164 = arith.sitofp %163 : vector<12x24xi32> to vector<12x24xf32>
    %cst_67 = arith.constant dense<0.000000e+00> : vector<12x32xf32>
    %165 = tpu.matmul %164, %154, %cst_67 {dimension_numbers = #tpu.dot_dimension_numbers<[1], [0], [0], [1], [0, 0, 1, 1], [], []>} : vector<12x24xf32>, vector<24x32xf32>, vector<12x32xf32> -> vector<12x32xf32>
    %166 = vector.extract_strided_slice %165 {offsets = [0, 0], sizes = [4, 32], strides = [1, 1]} : vector<12x32xf32> to vector<4x32xf32>
    %167 = vector.extract_strided_slice %165 {offsets = [4, 0], sizes = [4, 32], strides = [1, 1]} : vector<12x32xf32> to vector<4x32xf32>
    %168 = vector.extract_strided_slice %165 {offsets = [8, 0], sizes = [4, 32], strides = [1, 1]} : vector<12x32xf32> to vector<4x32xf32>
    %169 = arith.mulf %166, %166 : vector<4x32xf32>
    %cst_68 = arith.constant dense<0.000000e+00> : vector<4xf32>
    %170 = vector.multi_reduction <add>, %169, %cst_68 [1] : vector<4x32xf32> to vector<4xf32>
    %171 = vector.shape_cast %170 : vector<4xf32> to vector<4x1xf32>
    %172 = arith.mulf %167, %167 : vector<4x32xf32>
    %cst_69 = arith.constant dense<0.000000e+00> : vector<4xf32>
    %173 = vector.multi_reduction <add>, %172, %cst_69 [1] : vector<4x32xf32> to vector<4xf32>
    %174 = vector.shape_cast %173 : vector<4xf32> to vector<4x1xf32>
    %175 = arith.mulf %168, %168 : vector<4x32xf32>
    %cst_70 = arith.constant dense<0.000000e+00> : vector<4xf32>
    %176 = vector.multi_reduction <add>, %175, %cst_70 [1] : vector<4x32xf32> to vector<4xf32>
    %177 = vector.shape_cast %176 : vector<4xf32> to vector<4x1xf32>
    %178 = arith.mulf %166, %167 : vector<4x32xf32>
    %cst_71 = arith.constant dense<0.000000e+00> : vector<4xf32>
    %179 = vector.multi_reduction <add>, %178, %cst_71 [1] : vector<4x32xf32> to vector<4xf32>
    %180 = vector.shape_cast %179 : vector<4xf32> to vector<4x1xf32>
    %181 = arith.mulf %166, %168 : vector<4x32xf32>
    %cst_72 = arith.constant dense<0.000000e+00> : vector<4xf32>
    %182 = vector.multi_reduction <add>, %181, %cst_72 [1] : vector<4x32xf32> to vector<4xf32>
    %183 = vector.shape_cast %182 : vector<4xf32> to vector<4x1xf32>
    %184 = arith.mulf %171, %174 : vector<4x1xf32>
    %cst_73 = arith.constant 1.000000e-16 : f32
    %185 = vector.broadcast %cst_73 : f32 to vector<4x1xf32>
    %186 = arith.maximumf %184, %185 : vector<4x1xf32>
    %187 = math.sqrt %186 : vector<4x1xf32>
    %188 = arith.divf %180, %187 : vector<4x1xf32>
    %189 = arith.mulf %171, %177 : vector<4x1xf32>
    %cst_74 = arith.constant 1.000000e-16 : f32
    %190 = vector.broadcast %cst_74 : f32 to vector<4x1xf32>
    %191 = arith.maximumf %189, %190 : vector<4x1xf32>
    %192 = math.sqrt %191 : vector<4x1xf32>
    %193 = arith.divf %183, %192 : vector<4x1xf32>
    %cst_75 = arith.constant 1.000000e-01 : f32
    %194 = vector.broadcast %cst_75 : f32 to vector<4x1xf32>
    %195 = arith.divf %188, %194 : vector<4x1xf32>
    %cst_76 = arith.constant 1.000000e-01 : f32
    %196 = vector.broadcast %cst_76 : f32 to vector<4x1xf32>
    %197 = arith.divf %193, %196 : vector<4x1xf32>
    %198 = arith.maximumf %195, %197 : vector<4x1xf32>
    %199 = arith.subf %195, %198 : vector<4x1xf32>
    %200 = math.exp %199 : vector<4x1xf32>
    %201 = arith.subf %197, %198 : vector<4x1xf32>
    %202 = math.exp %201 : vector<4x1xf32>
    %203 = arith.addf %200, %202 : vector<4x1xf32>
    %204 = math.log %203 : vector<4x1xf32>
    %205 = arith.addf %198, %204 : vector<4x1xf32>
    %206 = arith.subf %205, %195 : vector<4x1xf32>
    %207 = vector.shape_cast %206 : vector<4x1xf32> to vector<1x4x1xf32>
    %cst_77 = arith.constant dense<0.000000e+00> : vector<1xf32>
    %208 = vector.multi_reduction <add>, %207, %cst_77 [1, 2] : vector<1x4x1xf32> to vector<1xf32>
    %209 = vector.shape_cast %208 : vector<1xf32> to vector<1x1x1xf32>
    %210 = vector.extract %209[0, 0, 0] : f32 from vector<1x1x1xf32>
    %cst_78 = arith.constant 4.000000e+00 : f32
    %211 = arith.divf %210, %cst_78 : f32
    %212 = arith.subf %180, %183 : vector<4x1xf32>
    %cst_79 = arith.constant 0.000000e+00 : f32
    %213 = vector.broadcast %cst_79 : f32 to vector<4x1xf32>
    %214 = arith.subf %213, %212 : vector<4x1xf32>
    %215 = math.exp %214 : vector<4x1xf32>
    %cst_80 = arith.constant 1.000000e+00 : f32
    %216 = vector.broadcast %cst_80 : f32 to vector<4x1xf32>
    %217 = arith.addf %216, %215 : vector<4x1xf32>
    %cst_81 = arith.constant 1.000000e+00 : f32
    %218 = vector.broadcast %cst_81 : f32 to vector<4x1xf32>
    %219 = arith.divf %218, %217 : vector<4x1xf32>
    %cst_82 = arith.constant 1.000000e-10 : f32
    %220 = vector.broadcast %cst_82 : f32 to vector<4x1xf32>
    %221 = arith.addf %220, %219 : vector<4x1xf32>
    %222 = math.log %221 : vector<4x1xf32>
    %223 = vector.shape_cast %222 : vector<4x1xf32> to vector<1x4x1xf32>
    %cst_83 = arith.constant dense<0.000000e+00> : vector<1xf32>
    %224 = vector.multi_reduction <add>, %223, %cst_83 [1, 2] : vector<1x4x1xf32> to vector<1xf32>
    %225 = vector.shape_cast %224 : vector<1xf32> to vector<1x1x1xf32>
    %226 = vector.extract %225[0, 0, 0] : f32 from vector<1x1x1xf32>
    %cst_84 = arith.constant 4.000000e+00 : f32
    %227 = arith.divf %226, %cst_84 : f32
    %cst_85 = arith.constant 0.000000e+00 : f32
    %228 = arith.subf %cst_85, %227 : f32
    %c1_86 = arith.constant 1 : index
    %229 = memref.load %arg0[%c1_86] : memref<3xf32, #tpu.memory_space<smem>>
    %230 = arith.mulf %229, %228 : f32
    %231 = arith.addf %125, %230 : f32
    %232 = arith.addf %231, %211 : f32
    %233 = vector.broadcast %232 : f32 to vector<1x1xf32>
    %c0_87 = arith.constant 0 : index
    %c0_88 = arith.constant 0 : index
    %234 = vector.load %arg6[%c0_87, %c0_88] : memref<1x1xf32, #tpu.memory_space<vmem>>, vector<1x1xf32>
    tpu.vector_store %arg6[%c0_87, %c0_88], %233 {strides = array<i32>} : memref<1x1xf32, #tpu.memory_space<vmem>>, vector<1x1xf32>,
    return
  }
}

</mosaic_0001>

<llo_original>
// kernel: tpu_custom_call.1
$region0: #{tpu_custom_call.1}
  #allocation0 [shape = 'u32[]', space=smem, size = 0x4, offset = 0x4, fixed_abs, tag = 'smem constant byte address 0x4 - core index']
  #allocation1 [shape = 'u32[72,128]{1,0:T(1,128)}', space=vmem, size = 0x9000, scoped, tag = 'internal scratch']
  %s0 = inlined_call_operand.vmem [shape: f32[3], index: 0, kind: input, shape index: {}]
  %s1 = inlined_call_operand.vmem [shape: s32[2,12,1], index: 1, kind: input, shape index: {}]
  %s2 = inlined_call_operand.vmem [shape: f32[24,32], index: 2, kind: input, shape index: {}]
  %s3 = inlined_call_operand.hbm [shape: bf16[2,24,24], index: 3, kind: input, shape index: {}]
  %s4 = inlined_call_operand.hbm [shape: bf16[3,32,32], index: 4, kind: input, shape index: {}]
  %s5 = inlined_call_operand.vmem [shape: f32[3,32], index: 5, kind: input, shape index: {}]
  %s6 = inlined_call_operand.hbm [shape: f32[1,1], index: 6, kind: output, shape index: {0}]
  %s7 = inlined_call_operand.hbm [shape: f32[2,24,32], index: 7, kind: output, shape index: {1}]
  %8 = xla_tuple %s6, %s7
  %s9 = sld [smem:[#allocation0]]
  $region54: #{tpu_custom_call.1} parent=0
    _
  %s11 = ssub.s32 1, %s9
  %s12 = scalar_select 0, %s11, %s9
  $region1: #{tpu_custom_call.1} parent=0
    #allocation2 [shape = 'u8[512]{0}', space=smem, size = 0x200, scoped, tag = 'input window, operand 0, single buffered']
    #allocation3 [shape = 's32[1]{0}', space=sflag, size = 0x4, scoped, tag = 'scoped memory for tpu_custom_call.1']
    #allocation4 [shape = 's32[1]{0}', space=sflag, size = 0x4, scoped, tag = 'scoped memory for tpu_custom_call.1']
    #allocation5 [shape = 's32[1]{0}', space=sflag, size = 0x4, scoped, tag = 'scoped memory for tpu_custom_call.1']
    #allocation6 [shape = 'u8[12288]{0}', space=vmem, size = 0x3000, scoped, tag = 'input window, operand 3, single buffered']
    #allocation7 [shape = 'u8[24576]{0}', space=vmem, size = 0x6000, scoped, tag = 'input window, operand 4, single buffered']
    #allocation8 [shape = 's32[1]{0}', space=sflag, size = 0x4, scoped, tag = 'scoped memory for tpu_custom_call.1']
    #allocation9 [shape = 'u8[512]{0}', space=vmem, size = 0x400, scoped, tag = 'output window, operand 0, single buffered']
    #allocation10 [shape = 'u8[24576]{0}', space=vmem, size = 0x6000, scoped, tag = 'output window, operand 1, single buffered']
    #allocation11 [shape = 's32[1]{0}', space=sflag, size = 0x4, scoped, tag = 'scoped memory for tpu_custom_call.1']
    %13 = vsyncpa [#allocation5], 0
    %14 = vsyncpa [#allocation3], 0
    %15 = vsyncpa [#allocation8], 0
    %16 = vsyncpa [#allocation4], 0
    %17 = vsyncpa [#allocation11], 0
    // Predicated region
    $region2: #{tpu_custom_call.1} parent=1 // pred_check
      _
    $region3: #{tpu_custom_call.1} parent=1 // pred_check_branch
      %19 = sbr.rel (0) target = $region5
    $region4: #{tpu_custom_call.1} parent=1 // pred_region
      %21 = vsyncadd [#allocation5], 0
      %s23 = sshll.u32 %s0, 4
      %s24 = int_to_ptr.vmem [resolvable:$true] %s23
      %26 = dma.vmem_to_smem %s24, 16, [#allocation2], [#allocation5]
    $region5: #{tpu_custom_call.1} parent=1 // pred_fallthru
      _
    // Predicated region
    $region6: #{tpu_custom_call.1} parent=1 // pred_check
      _
    $region7: #{tpu_custom_call.1} parent=1 // pred_check_branch
      %28 = sbr.rel (0) target = $region9
    $region8: #{tpu_custom_call.1} parent=1 // pred_region
      _
    $region9: #{tpu_custom_call.1} parent=1 // pred_fallthru
      _
    // Predicated region
    $region10: #{tpu_custom_call.1} parent=1 // pred_check
      _
    $region11: #{tpu_custom_call.1} parent=1 // pred_check_branch
      %30 = sbr.rel (0) target = $region13
    $region12: #{tpu_custom_call.1} parent=1 // pred_region
      _
    $region13: #{tpu_custom_call.1} parent=1 // pred_fallthru
      _
    // Predicated region
    $region14: #{tpu_custom_call.1} parent=1 // pred_check
      _
    $region15: #{tpu_custom_call.1} parent=1 // pred_check_branch
      %32 = sbr.rel (0) target = $region17
    $region16: #{tpu_custom_call.1} parent=1 // pred_region
      %34 = vsyncadd [#allocation3], 0
      %s35 = sshll.u32 %s3, 4
      %s36 = int_to_ptr.hbm [resolvable:$true] %s35
      %s37 = sshll.u32 [#allocation6], 4
      %s38 = int_to_ptr.vmem [resolvable:$true] %s37
      %43 = dma.hbm_to_vmem [thread:$0]  %s36, 384, %s38, [#allocation3], 64, 64, 4
    $region17: #{tpu_custom_call.1} parent=1 // pred_fallthru
      _
    // Predicated region
    $region18: #{tpu_custom_call.1} parent=1 // pred_check
      _
    $region19: #{tpu_custom_call.1} parent=1 // pred_check_branch
      %45 = sbr.rel (0) target = $region21
    $region20: #{tpu_custom_call.1} parent=1 // pred_region
      %47 = vsyncadd [#allocation8], 0
      %s48 = sshll.u32 %s4, 4
      %s49 = int_to_ptr.hbm [resolvable:$true] %s48
      %s50 = sshll.u32 [#allocation7], 4
      %s51 = int_to_ptr.vmem [resolvable:$true] %s50
      %56 = dma.hbm_to_vmem [thread:$0]  %s49, 768, %s51, [#allocation8], 64, 64, 4
    $region21: #{tpu_custom_call.1} parent=1 // pred_fallthru
      _
    // Predicated region
    $region22: #{tpu_custom_call.1} parent=1 // pred_check
      _
    $region23: #{tpu_custom_call.1} parent=1 // pred_check_branch
      %58 = sbr.rel (0) target = $region25
    $region24: #{tpu_custom_call.1} parent=1 // pred_region
      _
    $region25: #{tpu_custom_call.1} parent=1 // pred_fallthru
      _
    // Predicated region
    $region26: #{tpu_custom_call.1} parent=1 // pred_check
      _
    $region27: #{tpu_custom_call.1} parent=1 // pred_check_branch
      %60 = sbr.rel (0) target = $region29
    $region28: #{tpu_custom_call.1} parent=1 // pred_region
      %62 = dma.done [#allocation5], 16
    $region29: #{tpu_custom_call.1} parent=1 // pred_fallthru
      _
    // Predicated region
    $region30: #{tpu_custom_call.1} parent=1 // pred_check
      _
    $region31: #{tpu_custom_call.1} parent=1 // pred_check_branch
      %64 = sbr.rel (0) target = $region33
    $region32: #{tpu_custom_call.1} parent=1 // pred_region
      %66 = dma.done [#allocation3], 384
    $region33: #{tpu_custom_call.1} parent=1 // pred_fallthru
      _
    // Predicated region
    $region34: #{tpu_custom_call.1} parent=1 // pred_check
      _
    $region35: #{tpu_custom_call.1} parent=1 // pred_check_branch
      %68 = sbr.rel (0) target = $region37
    $region36: #{tpu_custom_call.1} parent=1 // pred_region
      %70 = dma.done [#allocation8], 768
    $region37: #{tpu_custom_call.1} parent=1 // pred_fallthru
      _
    %71 = sfence
    %v73 = vld [vmem:[%s2] sm:$0xff]
    %v74 = vld [vmem:[%s2 + $0x8] sm:$0xff]
    %v75 = vld [vmem:[%s2 + $0x10] sm:$0xff]
    %v76 = vmul.f32 %v73, %v73
    %v77 = vmul.f32 %v74, %v74
    %v78 = vmul.f32 %v75, %v75
    %vm79 = vcmask 261120
    %v80 = vsel %vm79, %v76, 0.0
    %81 = vadd.xlane.f32.xlu0 %v80
    %v82 = vpop.xlane.xlu0 %81
    %v83 = vsel %vm79, %v77, 0.0
    %84 = vadd.xlane.f32.xlu0 %v83
    %v85 = vpop.xlane.xlu0 %84
    %v86 = vsel %vm79, %v78, 0.0
    %87 = vadd.xlane.f32.xlu0 %v86
    %v88 = vpop.xlane.xlu0 %87
    %v89 = vlaneseq
    %v90 = vshrl.u32 %v89, 7
    %v91 = vadd.s32 %v90, 8
    %v92 = vadd.s32 %v90, 16
    %vm93 = vcmp.lt.s32.totalorder %v90, 9
    %vm94 = vcmp.lt.s32.totalorder %v91, 9
    %vm95 = vcmp.lt.s32.totalorder %v92, 9
    %v96 = vsel %vm93, 1, 0
    %v97 = vsel %vm94, 1, 0
    %v98 = vsel %vm95, 1, 0
    %v99 = vcvt.s32.f32 %v96
    %v100 = vcvt.s32.f32 %v97
    %v101 = vcvt.s32.f32 %v98
    %v102 = vmul.f32 %v82, %v99
    %v103 = vmul.f32 %v85, %v100
    %v104 = vmul.f32 %v88, %v101
    %vm105 = vcmask 7168
    %v106 = vsel %vm105, %v102, 0.0
    %v107 = vsel %vm105, %v103, 0.0
    %v108 = vadd.f32 %v106, %v107
    %v109 = vsel %vm105, %v104, 0.0
    %v110 = vadd.f32 %v108, %v109
    %111 = vadd.xlane.f32.xlu0 %v110
    %v112 = vpop.xlane.xlu0 %111
    %v113 = vrot.slane %v112, 4
    %v114 = vadd.f32 %v112, %v113
    %v115 = vrot.slane %v114, 2
    %v116 = vadd.f32 %v114, %v115
    %v117 = vrot.slane %v116, 1
    %v118 = vadd.f32 %v116, %v117
    %s119 = vtos %v118
    %v120 = vstv %s119
    %v121 = vrsqrt.pop %v120
    %v122 = vmul.f32 %v121, %v120
    %v123 = vmul.f32 %v122, %v121
    %v124 = vmul.f32 0.5, %v123
    %v125 = vsub.f32 1.5, %v124
    %v126 = vmul.f32 %v121, %v125
    %v127 = vmul.f32 %v120, %v126
    %vm128 = vcmp.eq.f32.partialorder %v120, inf
    %v129 = vsel %vm128, %v120, %v127
    %vm130 = vcmp.eq.f32.partialorder %v120, 0.0
    %v131 = vand.u32 %v120, 2147483648
    %v132 = vsel %vm130, %v131, %v129
    %s133 = vtos %v132
    %v134 = vsub.f32 1.0, %v99
    %v135 = vsub.f32 1.0, %v100
    %v136 = vsub.f32 1.0, %v101
    %v137 = vmul.f32 %v82, %v134
    %v138 = vmul.f32 %v85, %v135
    %v139 = vmul.f32 %v88, %v136
    %v140 = vsel %vm105, %v137, 0.0
    %v141 = vsel %vm105, %v138, 0.0
    %v142 = vadd.f32 %v140, %v141
    %v143 = vsel %vm105, %v139, 0.0
    %v144 = vadd.f32 %v142, %v143
    %145 = vadd.xlane.f32.xlu0 %v144
    %v146 = vpop.xlane.xlu0 %145
    %v147 = vrot.slane %v146, 4
    %v148 = vadd.f32 %v146, %v147
    %v149 = vrot.slane %v148, 2
    %v150 = vadd.f32 %v148, %v149
    %v151 = vrot.slane %v150, 1
    %v152 = vadd.f32 %v150, %v151
    %s153 = vtos %v152
    %v154 = vstv %s153
    %v155 = vrsqrt.pop %v154
    %v156 = vmul.f32 %v155, %v154
    %v157 = vmul.f32 %v156, %v155
    %v158 = vmul.f32 0.5, %v157
    %v159 = vsub.f32 1.5, %v158
    %v160 = vmul.f32 %v155, %v159
    %v161 = vmul.f32 %v154, %v160
    %vm162 = vcmp.eq.f32.partialorder %v154, inf
    %v163 = vsel %vm162, %v154, %v161
    %vm164 = vcmp.eq.f32.partialorder %v154, 0.0
    %v165 = vand.u32 %v154, 2147483648
    %v166 = vsel %vm164, %v165, %v163
    %s167 = vtos %v166
    %s168 = sadd.f32 %s133, %s167
    %s169 = sld [smem:[#allocation2 + $0x2]]
    %v170 = vrcp.pop 13.0
    %v171 = vmul.f32 13.0, %v170
    %v172 = vsub.f32 1.0, %v171
    %v173 = vmul.f32 %v170, %v172
    %v174 = vadd.f32 %v170, %v173
    %vm175 = vweird.f32 %v170
    %v176 = vsel %vm175, %v170, %v174
    %s177 = vtos %v176
    %s178 = smul.f32 %s168, %s177
    %s179 = smul.f32 %s169, %s178
    %v180 = vlaneseq
    %v181 = vand.u32 %v180, 127
    %v182 = vld [vmem:[#allocation6] sm:$0xf]
    %v183 = vld [vmem:[#allocation6 + $0x4] sm:$0xf]
    %v184 = vld [vmem:[#allocation6 + $0x8] sm:$0xf]
    %v185 = vpack.c.bf16 %v74, %v73
    %v186 = vpack.c.bf16 %v75, %v75
    %v187 = vld [vmem:[#allocation7] sm:$0xf]
    %v188 = vld [vmem:[#allocation7 + $0x4] sm:$0xf]
    %v189 = vld [vmem:[#allocation7 + $0x8] sm:$0xf]
    %v190 = vld [vmem:[#allocation7 + $0xc] sm:$0xf]
    %v195 = vunpack.c.l.b16 %v187
    %v196 = vunpack.c.l.b16 %v188
    %v197 = vunpack.c.l.b16 %v189
    %v198 = vunpack.c.l.b16 %v190
    %v199 = vpack.c.b16 %v196, %v195
    %v200 = vpack.c.b16 %v198, %v197
    %v204 = vsel %vm79, %v185, 0
    %v207 = vsel %vm79, %v186, 0
    %209 = vmatpush.bf16.msra.mxu0 0
    %210 = vmatpush.bf16.msra.mxu0 0
    %211 = vmatpush.bf16.msra.mxu0 0
    %212 = vmatpush.bf16.msra.mxu0 0
    %213 = vmatpush.bf16.msra.mxu0 0
    %214 = vmatpush.bf16.msra.mxu0 0
    %215 = vmatpush.bf16.msra.mxu0 %v200
    %216 = vmatpush.bf16.msra.mxu0 %v199
    %217 = vmatmul.bf16.gmra.mxu0 %v204
    %v218 = vpop.f32.mrf.mxu0
    %v219 = vadd.f32 0.0, %v218
    %v220 = vpop.f32.mrf.mxu0
    %v221 = vadd.f32 0.0, %v220
    %222 = vmatmul.bf16.gmra.mxu0 %v207
    %v223 = vpop.f32.mrf.mxu0
    %v224 = vadd.f32 0.0, %v223
    %v225 = vpop.f32.mrf.mxu0
    %226 = vdwg.mxu0
    %v227 = vpack.c.bf16 %v221, %v219
    %v228 = vpack.c.bf16 %v224, %v224
    %v229 = vld [vmem:[%s5] sm:$0x1]
    %v230 = vperm.slane %v229, 0
    %v234 = vunpack.c.l.b16 %v182
    %v235 = vunpack.c.l.b16 %v183
    %v236 = vunpack.c.l.b16 %v184
    %v237 = vpack.c.b16 %v235, %v234
    %v238 = vpack.c.b16 %v236, %v236
    %vm239 = vcmask 195584
    %v241 = vsel %vm239, %v237, 0
    %v244 = vsel %vm239, %v238, 0
    %vm246 = vcmask 1043456
    %v248 = vsel %vm246, %v228, 0
    %250 = vmatpush.bf16.msra.mxu0 0
    %251 = vmatpush.bf16.msra.mxu0 0
    %252 = vmatpush.bf16.msra.mxu0 0
    %253 = vmatpush.bf16.msra.mxu0 0
    %254 = vmatpush.bf16.msra.mxu0 0
    %255 = vmatpush.bf16.msra.mxu0 0
    %256 = vmatpush.bf16.msra.mxu0 %v248
    %257 = vmatpush.bf16.msra.mxu0 %v227
    %258 = vmatmul.bf16.gmra.mxu0 %v241
    %v259 = vpop.f32.mrf.mxu0
    %v260 = vadd.f32 %v230, %v259
    %v261 = vpop.f32.mrf.mxu0
    %v262 = vadd.f32 %v230, %v261
    %263 = vmatmul.bf16.gmra.mxu0 %v244
    %v264 = vpop.f32.mrf.mxu0
    %v265 = vadd.f32 %v230, %v264
    %v266 = vpop.f32.mrf.mxu0
    %267 = vdwg.mxu0
    %v268 = vmul.f32 %v260, %v260
    %v269 = vmul.f32 %v262, %v262
    %v270 = vmul.f32 %v265, %v265
    %v271 = vsel %vm79, %v268, 0.0
    %272 = vadd.xlane.f32.xlu0 %v271
    %v273 = vpop.xlane.xlu0 %272
    %v274 = vsel %vm79, %v269, 0.0
    %275 = vadd.xlane.f32.xlu0 %v274
    %v276 = vpop.xlane.xlu0 %275
    %v277 = vsel %vm79, %v270, 0.0
    %278 = vadd.xlane.f32.xlu0 %v277
    %v279 = vpop.xlane.xlu0 %278
    %v280 = vrsqrt.pop %v273
    %v281 = vmul.f32 %v280, %v273
    %v282 = vmul.f32 %v281, %v280
    %v283 = vmul.f32 0.5, %v282
    %v284 = vsub.f32 1.5, %v283
    %v285 = vmul.f32 %v280, %v284
    %v286 = vmul.f32 %v273, %v285
    %vm287 = vcmp.eq.f32.partialorder %v273, inf
    %v288 = vsel %vm287, %v273, %v286
    %vm289 = vcmp.eq.f32.partialorder %v273, 0.0
    %v290 = vand.u32 %v273, 2147483648
    %v291 = vsel %vm289, %v290, %v288
    %v292 = vrsqrt.pop %v276
    %v293 = vmul.f32 %v292, %v276
    %v294 = vmul.f32 %v293, %v292
    %v295 = vmul.f32 0.5, %v294
    %v296 = vsub.f32 1.5, %v295
    %v297 = vmul.f32 %v292, %v296
    %v298 = vmul.f32 %v276, %v297
    %vm299 = vcmp.eq.f32.partialorder %v276, inf
    %v300 = vsel %vm299, %v276, %v298
    %vm301 = vcmp.eq.f32.partialorder %v276, 0.0
    %v302 = vand.u32 %v276, 2147483648
    %v303 = vsel %vm301, %v302, %v300
    %v304 = vrsqrt.pop %v279
    %v305 = vmul.f32 %v304, %v279
    %v306 = vmul.f32 %v305, %v304
    %v307 = vmul.f32 0.5, %v306
    %v308 = vsub.f32 1.5, %v307
    %v309 = vmul.f32 %v304, %v308
    %v310 = vmul.f32 %v279, %v309
    %vm311 = vcmp.eq.f32.partialorder %v279, inf
    %v312 = vsel %vm311, %v279, %v310
    %vm313 = vcmp.eq.f32.partialorder %v279, 0.0
    %v314 = vand.u32 %v279, 2147483648
    %v315 = vsel %vm313, %v314, %v312
    %v316 = vmax.f32 %v291, 1e-12
    %v317 = vmax.f32 %v303, 1e-12
    %v318 = vmax.f32 %v315, 1e-12
    %v319 = vrcp.pop %v316
    %v320 = vmul.f32 %v316, %v319
    %v321 = vsub.f32 1.0, %v320
    %v322 = vmul.f32 %v319, %v321
    %v323 = vadd.f32 %v319, %v322
    %vm324 = vweird.f32 %v316
    %vm325 = vweird.f32 %v319
    %vm326 = vmor %vm324, %vm325
    %v327 = vsel %vm326, %v319, %v323
    %v328 = vand.u32 2147483647, %v316
    %vm329 = vcmp.eq.f32.partialorder %v328, 8.507059e+37
    %v330 = vand.u32 %v316, 2147483648
    %v331 = vor.u32 1.1754944e-38, %v330
    %v332 = vsel %vm329, %v331, %v327
    %v333 = vmul.f32 %v260, %v332
    %v334 = vrcp.pop %v317
    %v335 = vmul.f32 %v317, %v334
    %v336 = vsub.f32 1.0, %v335
    %v337 = vmul.f32 %v334, %v336
    %v338 = vadd.f32 %v334, %v337
    %vm339 = vweird.f32 %v317
    %vm340 = vweird.f32 %v334
    %vm341 = vmor %vm339, %vm340
    %v342 = vsel %vm341, %v334, %v338
    %v343 = vand.u32 2147483647, %v317
    %vm344 = vcmp.eq.f32.partialorder %v343, 8.507059e+37
    %v345 = vand.u32 %v317, 2147483648
    %v346 = vor.u32 1.1754944e-38, %v345
    %v347 = vsel %vm344, %v346, %v342
    %v348 = vmul.f32 %v262, %v347
    %v349 = vrcp.pop %v318
    %v350 = vmul.f32 %v318, %v349
    %v351 = vsub.f32 1.0, %v350
    %v352 = vmul.f32 %v349, %v351
    %v353 = vadd.f32 %v349, %v352
    %vm354 = vweird.f32 %v318
    %vm355 = vweird.f32 %v349
    %vm356 = vmor %vm354, %vm355
    %v357 = vsel %vm356, %v349, %v353
    %v358 = vand.u32 2147483647, %v318
    %vm359 = vcmp.eq.f32.partialorder %v358, 8.507059e+37
    %v360 = vand.u32 %v318, 2147483648
    %v361 = vor.u32 1.1754944e-38, %v360
    %v362 = vsel %vm359, %v361, %v357
    %v363 = vmul.f32 %v265, %v362
    %v364 = vadd.f32 %v333, %v73
    %v365 = vadd.f32 %v348, %v74
    %v366 = vadd.f32 %v363, %v75
    %367 = vst.msk [vmem:[#allocation10] sm:$0xff] %vm79, %v364
    %368 = vst.msk [vmem:[#allocation10 + $0x8] sm:$0xff] %vm79, %v365
    %369 = vst.msk [vmem:[#allocation10 + $0x10] sm:$0xff] %vm79, %v366
    %v370 = vld [vmem:[%s1] sm:$0xff]
    %v371 = vld [vmem:[%s1 + $0x8] sm:$0xf]
    %372 = vset.pattern.permute.xlu0 0
    %373 = vperm.xlu0 %372, %v370
    %v374 = vpop.permute.xlu0 %373
    %375 = vset.pattern.permute.xlu0 0
    %376 = vperm.xlu0 %375, %v371
    %v377 = vpop.permute.xlu0 %376
    %vm378 = vcmp.eq.s32.totalorder %v374, %v181
    %vm379 = vcmp.eq.s32.totalorder %v377, %v181
    %v380 = vsel %vm378, 1, 0
    %v381 = vsel %vm379, 1, 0
    %v382 = vcvt.s32.f32 %v380
    %v383 = vcvt.s32.f32 %v381
    %v385 = vsel %vm239, %v382, 0
    %v388 = vsel %vm239, %v383, 0
    %390 = vmatpush.msra.mxu0 0.0
    %391 = vmatpush.msra.mxu0 0.0
    %392 = vmatpush.msra.mxu0 0.0
    %393 = vmatpush.msra.mxu0 0.0
    %394 = vmatpush.msra.mxu0 0.0
    %395 = vmatpush.msra.mxu0 0.0
    %396 = vmatpush.msra.mxu0 0.0
    %397 = vmatpush.msra.mxu0 0.0
    %398 = vmatpush.msra.mxu0 0.0
    %399 = vmatpush.msra.mxu0 0.0
    %400 = vmatpush.msra.mxu0 0.0
    %401 = vmatpush.msra.mxu0 0.0
    %402 = vmatpush.msra.mxu0 0.0
    %403 = vmatpush.msra.mxu0 %v366
    %404 = vmatpush.msra.mxu0 %v365
    %405 = vmatpush.msra.mxu0 %v364
    %406 = vmatmul.f32.gmra.mxu0 %v385
    %v407 = vpop.f32.mrf.mxu0
    %v408 = vadd.f32 0.0, %v407
    %409 = vmatmul.f32.gmra.mxu0 %v388
    %v410 = vpop.f32.mrf.mxu0
    %v411 = vadd.f32 0.0, %v410
    %412 = vdwg.mxu0
    %v413 = vmul.f32 %v408, %v408
    %vm414 = vcmask 257024
    %v415 = vsel %vm414, %v413, 0.0
    %416 = vadd.xlane.f32.xlu0 %v415
    %v417 = vpop.xlane.xlu0 %416
    %vm418 = vcmask 261124
    %v419 = vsel %vm418, %v413, 0.0
    %420 = vadd.xlane.f32.xlu0 %v419
    %v421 = vpop.xlane.xlu0 %420
    %v422 = vmul.f32 %v411, %v411
    %v423 = vsel %vm414, %v422, 0.0
    %424 = vadd.xlane.f32.xlu0 %v423
    %v425 = vpop.xlane.xlu0 %424
    %v427 = vrot.slane %v408, 4
    %v429 = vmul.f32 %v408, %v427
    %v430 = vsel %vm414, %v429, 0.0
    %431 = vadd.xlane.f32.xlu0 %v430
    %v432 = vpop.xlane.xlu0 %431
    %v433 = vmul.f32 %v408, %v411
    %v434 = vsel %vm414, %v433, 0.0
    %435 = vadd.xlane.f32.xlu0 %v434
    %v436 = vpop.xlane.xlu0 %435
    %v438 = vrot.slane %v421, 4
    %v440 = vmul.f32 %v417, %v438
    %v441 = vmax.f32 %v440, 1e-16
    %v442 = vrsqrt.pop %v441
    %v443 = vmul.f32 %v442, %v441
    %v444 = vmul.f32 %v443, %v442
    %v445 = vmul.f32 0.5, %v444
    %v446 = vsub.f32 1.5, %v445
    %v447 = vmul.f32 %v442, %v446
    %v448 = vmul.f32 %v441, %v447
    %vm449 = vcmp.eq.f32.partialorder %v441, inf
    %v450 = vsel %vm449, %v441, %v448
    %vm451 = vcmp.eq.f32.partialorder %v441, 0.0
    %v452 = vand.u32 %v441, 2147483648
    %v453 = vsel %vm451, %v452, %v450
    %v454 = vrcp.pop %v453
    %v455 = vmul.f32 %v453, %v454
    %v456 = vsub.f32 1.0, %v455
    %v457 = vmul.f32 %v454, %v456
    %v458 = vadd.f32 %v454, %v457
    %vm459 = vweird.f32 %v453
    %vm460 = vweird.f32 %v454
    %vm461 = vmor %vm459, %vm460
    %v462 = vsel %vm461, %v454, %v458
    %v463 = vand.u32 2147483647, %v453
    %vm464 = vcmp.eq.f32.partialorder %v463, 8.507059e+37
    %v465 = vand.u32 %v453, 2147483648
    %v466 = vor.u32 1.1754944e-38, %v465
    %v467 = vsel %vm464, %v466, %v462
    %v468 = vmul.f32 %v432, %v467
    %v469 = vmul.f32 %v417, %v425
    %v470 = vmax.f32 %v469, 1e-16
    %v471 = vrsqrt.pop %v470
    %v472 = vmul.f32 %v471, %v470
    %v473 = vmul.f32 %v472, %v471
    %v474 = vmul.f32 0.5, %v473
    %v475 = vsub.f32 1.5, %v474
    %v476 = vmul.f32 %v471, %v475
    %v477 = vmul.f32 %v470, %v476
    %vm478 = vcmp.eq.f32.partialorder %v470, inf
    %v479 = vsel %vm478, %v470, %v477
    %vm480 = vcmp.eq.f32.partialorder %v470, 0.0
    %v481 = vand.u32 %v470, 2147483648
    %v482 = vsel %vm480, %v481, %v479
    %v483 = vrcp.pop %v482
    %v484 = vmul.f32 %v482, %v483
    %v485 = vsub.f32 1.0, %v484
    %v486 = vmul.f32 %v483, %v485
    %v487 = vadd.f32 %v483, %v486
    %vm488 = vweird.f32 %v482
    %vm489 = vweird.f32 %v483
    %vm490 = vmor %vm488, %vm489
    %v491 = vsel %vm490, %v483, %v487
    %v492 = vand.u32 2147483647, %v482
    %vm493 = vcmp.eq.f32.partialorder %v492, 8.507059e+37
    %v494 = vand.u32 %v482, 2147483648
    %v495 = vor.u32 1.1754944e-38, %v494
    %v496 = vsel %vm493, %v495, %v491
    %v497 = vmul.f32 %v436, %v496
    %v498 = vrcp.pop 0.1
    %v499 = vmul.f32 0.1, %v498
    %v500 = vsub.f32 1.0, %v499
    %v501 = vmul.f32 %v498, %v500
    %v502 = vadd.f32 %v498, %v501
    %vm503 = vweird.f32 %v498
    %v504 = vsel %vm503, %v498, %v502
    %v505 = vmul.f32 %v468, %v504
    %v506 = vmul.f32 %v497, %v504
    %v507 = vmax.f32 %v505, %v506
    %v508 = vsub.f32 %v505, %v507
    %v509 = vmul.f32 %v508, 1.442695
    %v510 = vpow.pop %v509
    %v511 = vsub.f32 %v506, %v507
    %v512 = vmul.f32 %v511, 1.442695
    %v513 = vpow.pop %v512
    %v514 = vadd.f32 %v510, %v513
    %v515 = vlog2.pop %v514
    %v516 = vmul.f32 %v515, 0.6931472
    %v517 = vadd.f32 %v507, %v516
    %v518 = vsub.f32 %v517, %v505
    %vm519 = vcmask 3072
    %v520 = vsel %vm519, %v518, 0.0
    %521 = vadd.xlane.f32.xlu0 %v520
    %v522 = vpop.xlane.xlu0 %521
    %v523 = vrot.slane %v522, 4
    %v524 = vadd.f32 %v522, %v523
    %v525 = vrot.slane %v524, 2
    %v526 = vadd.f32 %v524, %v525
    %v527 = vrot.slane %v526, 1
    %v528 = vadd.f32 %v526, %v527
    %s529 = vtos %v528
    %v530 = vrcp.pop 4.0
    %v531 = vmul.f32 4.0, %v530
    %v532 = vsub.f32 1.0, %v531
    %v533 = vmul.f32 %v530, %v532
    %v534 = vadd.f32 %v530, %v533
    %vm535 = vweird.f32 %v530
    %v536 = vsel %vm535, %v530, %v534
    %s537 = vtos %v536
    %s538 = smul.f32 %s529, %s537
    %v539 = vsub.f32 %v432, %v436
    %v540 = vsub.f32 0.0, %v539
    %v541 = vmul.f32 %v540, 1.442695
    %v542 = vpow.pop %v541
    %v543 = vadd.f32 %v542, 1.0
    %v544 = vrcp.pop %v543
    %v545 = vmul.f32 %v543, %v544
    %v546 = vsub.f32 1.0, %v545
    %v547 = vmul.f32 %v544, %v546
    %v548 = vadd.f32 %v544, %v547
    %vm549 = vweird.f32 %v543
    %vm550 = vweird.f32 %v544
    %vm551 = vmor %vm549, %vm550
    %v552 = vsel %vm551, %v544, %v548
    %v553 = vand.u32 2147483647, %v543
    %vm554 = vcmp.eq.f32.partialorder %v553, 8.507059e+37
    %v555 = vand.u32 %v543, 2147483648
    %v556 = vor.u32 1.1754944e-38, %v555
    %v557 = vsel %vm554, %v556, %v552
    %v558 = vmul.f32 1.0, %v557
    %v559 = vadd.f32 %v558, 1e-10
    %v560 = vlog2.pop %v559
    %v561 = vmul.f32 %v560, 0.6931472
    %v562 = vsel %vm519, %v561, 0.0
    %563 = vadd.xlane.f32.xlu0 %v562
    %v564 = vpop.xlane.xlu0 %563
    %v565 = vrot.slane %v564, 4
    %v566 = vadd.f32 %v564, %v565
    %v567 = vrot.slane %v566, 2
    %v568 = vadd.f32 %v566, %v567
    %v569 = vrot.slane %v568, 1
    %v570 = vadd.f32 %v568, %v569
    %s571 = vtos %v570
    %v572 = vrcp.pop 4.0
    %v573 = vmul.f32 4.0, %v572
    %v574 = vsub.f32 1.0, %v573
    %v575 = vmul.f32 %v572, %v574
    %v576 = vadd.f32 %v572, %v575
    %vm577 = vweird.f32 %v572
    %v578 = vsel %vm577, %v572, %v576
    %s579 = vtos %v578
    %s580 = smul.f32 %s571, %s579
    %s581 = ssub.f32 0.0, %s580
    %s582 = sld [smem:[#allocation2]]
    %s583 = smul.f32 %s582, %s581
    %s584 = sadd.f32 %s179, %s583
    %s585 = sadd.f32 %s584, %s538
    %s586 = scalar_lea.vmem [#allocation6], 12
    %v587 = vld [vmem:[%s586] sm:$0xf]
    %v588 = vld [vmem:[%s586 + $0x4] sm:$0xf]
    %v589 = vld [vmem:[%s586 + $0x8] sm:$0xf]
    %v590 = vpack.c.bf16 %v365, %v364
    %v591 = vpack.c.bf16 %v366, %v366
    %s592 = scalar_lea.vmem [#allocation7], 16
    %v593 = vld [vmem:[%s592] sm:$0xf]
    %v594 = vld [vmem:[%s592 + $0x4] sm:$0xf]
    %v595 = vld [vmem:[%s592 + $0x8] sm:$0xf]
    %v596 = vld [vmem:[%s592 + $0xc] sm:$0xf]
    %v601 = vunpack.c.l.b16 %v593
    %v602 = vunpack.c.l.b16 %v594
    %v603 = vunpack.c.l.b16 %v595
    %v604 = vunpack.c.l.b16 %v596
    %v605 = vpack.c.b16 %v602, %v601
    %v606 = vpack.c.b16 %v604, %v603
    %v610 = vsel %vm79, %v590, 0
    %v613 = vsel %vm79, %v591, 0
    %615 = vmatpush.bf16.msra.mxu0 0
    %616 = vmatpush.bf16.msra.mxu0 0
    %617 = vmatpush.bf16.msra.mxu0 0
    %618 = vmatpush.bf16.msra.mxu0 0
    %619 = vmatpush.bf16.msra.mxu0 0
    %620 = vmatpush.bf16.msra.mxu0 0
    %621 = vmatpush.bf16.msra.mxu0 %v606
    %622 = vmatpush.bf16.msra.mxu0 %v605
    %623 = vmatmul.bf16.gmra.mxu0 %v610
    %v624 = vpop.f32.mrf.mxu0
    %v625 = vadd.f32 0.0, %v624
    %v626 = vpop.f32.mrf.mxu0
    %v627 = vadd.f32 0.0, %v626
    %628 = vmatmul.bf16.gmra.mxu0 %v613
    %v629 = vpop.f32.mrf.mxu0
    %v630 = vadd.f32 0.0, %v629
    %v631 = vpop.f32.mrf.mxu0
    %632 = vdwg.mxu0
    %v633 = vpack.c.bf16 %v627, %v625
    %v634 = vpack.c.bf16 %v630, %v630
    %v635 = vld [vmem:[%s5 + $0x1] sm:$0x1]
    %v636 = vperm.slane %v635, 0
    %v640 = vunpack.c.l.b16 %v587
    %v641 = vunpack.c.l.b16 %v588
    %v642 = vunpack.c.l.b16 %v589
    %v643 = vpack.c.b16 %v641, %v640
    %v644 = vpack.c.b16 %v642, %v642
    %v646 = vsel %vm239, %v643, 0
    %v649 = vsel %vm239, %v644, 0
    %v652 = vsel %vm246, %v634, 0
    %654 = vmatpush.bf16.msra.mxu0 0
    %655 = vmatpush.bf16.msra.mxu0 0
    %656 = vmatpush.bf16.msra.mxu0 0
    %657 = vmatpush.bf16.msra.mxu0 0
    %658 = vmatpush.bf16.msra.mxu0 0
    %659 = vmatpush.bf16.msra.mxu0 0
    %660 = vmatpush.bf16.msra.mxu0 %v652
    %661 = vmatpush.bf16.msra.mxu0 %v633
    %662 = vmatmul.bf16.gmra.mxu0 %v646
    %v663 = vpop.f32.mrf.mxu0
    %v664 = vadd.f32 %v636, %v663
    %v665 = vpop.f32.mrf.mxu0
    %v666 = vadd.f32 %v636, %v665
    %667 = vmatmul.bf16.gmra.mxu0 %v649
    %v668 = vpop.f32.mrf.mxu0
    %v669 = vadd.f32 %v636, %v668
    %v670 = vpop.f32.mrf.mxu0
    %671 = vdwg.mxu0
    %v672 = vpack.c.bf16 %v666, %v664
    %v673 = vpack.c.bf16 %v669, %v669
    %s674 = scalar_lea.vmem [#allocation7], 32
    %v675 = vld [vmem:[%s674] sm:$0xf]
    %v676 = vld [vmem:[%s674 + $0x4] sm:$0xf]
    %v677 = vld [vmem:[%s674 + $0x8] sm:$0xf]
    %v678 = vld [vmem:[%s674 + $0xc] sm:$0xf]
    %v683 = vunpack.c.l.b16 %v675
    %v684 = vunpack.c.l.b16 %v676
    %v685 = vunpack.c.l.b16 %v677
    %v686 = vunpack.c.l.b16 %v678
    %v687 = vpack.c.b16 %v684, %v683
    %v688 = vpack.c.b16 %v686, %v685
    %v692 = vsel %vm79, %v672, 0
    %v695 = vsel %vm79, %v673, 0
    %697 = vmatpush.bf16.msra.mxu0 0
    %698 = vmatpush.bf16.msra.mxu0 0
    %699 = vmatpush.bf16.msra.mxu0 0
    %700 = vmatpush.bf16.msra.mxu0 0
    %701 = vmatpush.bf16.msra.mxu0 0
    %702 = vmatpush.bf16.msra.mxu0 0
    %703 = vmatpush.bf16.msra.mxu0 %v688
    %704 = vmatpush.bf16.msra.mxu0 %v687
    %705 = vmatmul.bf16.gmra.mxu0 %v692
    %v706 = vpop.f32.mrf.mxu0
    %v707 = vadd.f32 0.0, %v706
    %v708 = vpop.f32.mrf.mxu0
    %v709 = vadd.f32 0.0, %v708
    %710 = vmatmul.bf16.gmra.mxu0 %v695
    %v711 = vpop.f32.mrf.mxu0
    %v712 = vadd.f32 0.0, %v711
    %v713 = vpop.f32.mrf.mxu0
    %714 = vdwg.mxu0
    %v715 = vpack.c.bf16 %v709, %v707
    %v716 = vpack.c.bf16 %v712, %v712
    %v717 = vld [vmem:[%s5 + $0x2] sm:$0x1]
    %v718 = vperm.slane %v717, 0
    %v720 = vsel %vm246, %v716, 0
    %722 = vmatpush.bf16.msra.mxu0 0
    %723 = vmatpush.bf16.msra.mxu0 0
    %724 = vmatpush.bf16.msra.mxu0 0
    %725 = vmatpush.bf16.msra.mxu0 0
    %726 = vmatpush.bf16.msra.mxu0 0
    %727 = vmatpush.bf16.msra.mxu0 0
    %728 = vmatpush.bf16.msra.mxu0 %v720
    %729 = vmatpush.bf16.msra.mxu0 %v715
    %730 = vmatmul.bf16.gmra.mxu0 %v646
    %v731 = vpop.f32.mrf.mxu0
    %v732 = vadd.f32 %v718, %v731
    %v733 = vpop.f32.mrf.mxu0
    %v734 = vadd.f32 %v718, %v733
    %735 = vmatmul.bf16.gmra.mxu0 %v649
    %v736 = vpop.f32.mrf.mxu0
    %v737 = vadd.f32 %v718, %v736
    %v738 = vpop.f32.mrf.mxu0
    %739 = vdwg.mxu0
    %v740 = vmul.f32 %v732, %v732
    %v741 = vmul.f32 %v734, %v734
    %v742 = vmul.f32 %v737, %v737
    %v743 = vsel %vm79, %v740, 0.0
    %744 = vadd.xlane.f32.xlu0 %v743
    %v745 = vpop.xlane.xlu0 %744
    %v746 = vsel %vm79, %v741, 0.0
    %747 = vadd.xlane.f32.xlu0 %v746
    %v748 = vpop.xlane.xlu0 %747
    %v749 = vsel %vm79, %v742, 0.0
    %750 = vadd.xlane.f32.xlu0 %v749
    %v751 = vpop.xlane.xlu0 %750
    %v752 = vrsqrt.pop %v745
    %v753 = vmul.f32 %v752, %v745
    %v754 = vmul.f32 %v753, %v752
    %v755 = vmul.f32 0.5, %v754
    %v756 = vsub.f32 1.5, %v755
    %v757 = vmul.f32 %v752, %v756
    %v758 = vmul.f32 %v745, %v757
    %vm759 = vcmp.eq.f32.partialorder %v745, inf
    %v760 = vsel %vm759, %v745, %v758
    %vm761 = vcmp.eq.f32.partialorder %v745, 0.0
    %v762 = vand.u32 %v745, 2147483648
    %v763 = vsel %vm761, %v762, %v760
    %v764 = vrsqrt.pop %v748
    %v765 = vmul.f32 %v764, %v748
    %v766 = vmul.f32 %v765, %v764
    %v767 = vmul.f32 0.5, %v766
    %v768 = vsub.f32 1.5, %v767
    %v769 = vmul.f32 %v764, %v768
    %v770 = vmul.f32 %v748, %v769
    %vm771 = vcmp.eq.f32.partialorder %v748, inf
    %v772 = vsel %vm771, %v748, %v770
    %vm773 = vcmp.eq.f32.partialorder %v748, 0.0
    %v774 = vand.u32 %v748, 2147483648
    %v775 = vsel %vm773, %v774, %v772
    %v776 = vrsqrt.pop %v751
    %v777 = vmul.f32 %v776, %v751
    %v778 = vmul.f32 %v777, %v776
    %v779 = vmul.f32 0.5, %v778
    %v780 = vsub.f32 1.5, %v779
    %v781 = vmul.f32 %v776, %v780
    %v782 = vmul.f32 %v751, %v781
    %vm783 = vcmp.eq.f32.partialorder %v751, inf
    %v784 = vsel %vm783, %v751, %v782
    %vm785 = vcmp.eq.f32.partialorder %v751, 0.0
    %v786 = vand.u32 %v751, 2147483648
    %v787 = vsel %vm785, %v786, %v784
    %v788 = vmax.f32 %v763, 1e-12
    %v789 = vmax.f32 %v775, 1e-12
    %v790 = vmax.f32 %v787, 1e-12
    %v791 = vrcp.pop %v788
    %v792 = vmul.f32 %v788, %v791
    %v793 = vsub.f32 1.0, %v792
    %v794 = vmul.f32 %v791, %v793
    %v795 = vadd.f32 %v791, %v794
    %vm796 = vweird.f32 %v788
    %vm797 = vweird.f32 %v791
    %vm798 = vmor %vm796, %vm797
    %v799 = vsel %vm798, %v791, %v795
    %v800 = vand.u32 2147483647, %v788
    %vm801 = vcmp.eq.f32.partialorder %v800, 8.507059e+37
    %v802 = vand.u32 %v788, 2147483648
    %v803 = vor.u32 1.1754944e-38, %v802
    %v804 = vsel %vm801, %v803, %v799
    %v805 = vmul.f32 %v732, %v804
    %v806 = vrcp.pop %v789
    %v807 = vmul.f32 %v789, %v806
    %v808 = vsub.f32 1.0, %v807
    %v809 = vmul.f32 %v806, %v808
    %v810 = vadd.f32 %v806, %v809
    %vm811 = vweird.f32 %v789
    %vm812 = vweird.f32 %v806
    %vm813 = vmor %vm811, %vm812
    %v814 = vsel %vm813, %v806, %v810
    %v815 = vand.u32 2147483647, %v789
    %vm816 = vcmp.eq.f32.partialorder %v815, 8.507059e+37
    %v817 = vand.u32 %v789, 2147483648
    %v818 = vor.u32 1.1754944e-38, %v817
    %v819 = vsel %vm816, %v818, %v814
    %v820 = vmul.f32 %v734, %v819
    %v821 = vrcp.pop %v790
    %v822 = vmul.f32 %v790, %v821
    %v823 = vsub.f32 1.0, %v822
    %v824 = vmul.f32 %v821, %v823
    %v825 = vadd.f32 %v821, %v824
    %vm826 = vweird.f32 %v790
    %vm827 = vweird.f32 %v821
    %vm828 = vmor %vm826, %vm827
    %v829 = vsel %vm828, %v821, %v825
    %v830 = vand.u32 2147483647, %v790
    %vm831 = vcmp.eq.f32.partialorder %v830, 8.507059e+37
    %v832 = vand.u32 %v790, 2147483648
    %v833 = vor.u32 1.1754944e-38, %v832
    %v834 = vsel %vm831, %v833, %v829
    %v835 = vmul.f32 %v737, %v834
    %v836 = vadd.f32 %v805, %v364
    %v837 = vadd.f32 %v820, %v365
    %v838 = vadd.f32 %v835, %v366
    %s839 = scalar_lea.vmem [#allocation10], 24
    %840 = vst.msk [vmem:[%s839] sm:$0xff] %vm79, %v836
    %841 = vst.msk [vmem:[%s839 + $0x8] sm:$0xff] %vm79, %v837
    %842 = vst.msk [vmem:[%s839 + $0x10] sm:$0xff] %vm79, %v838
    %s843 = scalar_lea.vmem %s1, 16
    %v844 = vld [vmem:[%s843] sm:$0xff]
    %v845 = vld [vmem:[%s843 + $0x8] sm:$0xf]
    %846 = vset.pattern.permute.xlu0 0
    %847 = vperm.xlu0 %846, %v844
    %v848 = vpop.permute.xlu0 %847
    %849 = vset.pattern.permute.xlu0 0
    %850 = vperm.xlu0 %849, %v845
    %v851 = vpop.permute.xlu0 %850
    %vm852 = vcmp.eq.s32.totalorder %v848, %v181
    %vm853 = vcmp.eq.s32.totalorder %v851, %v181
    %v854 = vsel %vm852, 1, 0
    %v855 = vsel %vm853, 1, 0
    %v856 = vcvt.s32.f32 %v854
    %v857 = vcvt.s32.f32 %v855
    %v859 = vsel %vm239, %v856, 0
    %v862 = vsel %vm239, %v857, 0
    %864 = vmatpush.msra.mxu0 0.0
    %865 = vmatpush.msra.mxu0 0.0
    %866 = vmatpush.msra.mxu0 0.0
    %867 = vmatpush.msra.mxu0 0.0
    %868 = vmatpush.msra.mxu0 0.0
    %869 = vmatpush.msra.mxu0 0.0
    %870 = vmatpush.msra.mxu0 0.0
    %871 = vmatpush.msra.mxu0 0.0
    %872 = vmatpush.msra.mxu0 0.0
    %873 = vmatpush.msra.mxu0 0.0
    %874 = vmatpush.msra.mxu0 0.0
    %875 = vmatpush.msra.mxu0 0.0
    %876 = vmatpush.msra.mxu0 0.0
    %877 = vmatpush.msra.mxu0 %v838
    %878 = vmatpush.msra.mxu0 %v837
    %879 = vmatpush.msra.mxu0 %v836
    %880 = vmatmul.f32.gmra.mxu0 %v859
    %v881 = vpop.f32.mrf.mxu0
    %v882 = vadd.f32 0.0, %v881
    %883 = vmatmul.f32.gmra.mxu0 %v862
    %v884 = vpop.f32.mrf.mxu0
    %v885 = vadd.f32 0.0, %v884
    %886 = vdwg.mxu0
    %v887 = vmul.f32 %v882, %v882
    %v888 = vsel %vm414, %v887, 0.0
    %889 = vadd.xlane.f32.xlu0 %v888
    %v890 = vpop.xlane.xlu0 %889
    %v891 = vsel %vm418, %v887, 0.0
    %892 = vadd.xlane.f32.xlu0 %v891
    %v893 = vpop.xlane.xlu0 %892
    %v894 = vmul.f32 %v885, %v885
    %v895 = vsel %vm414, %v894, 0.0
    %896 = vadd.xlane.f32.xlu0 %v895
    %v897 = vpop.xlane.xlu0 %896
    %v899 = vrot.slane %v882, 4
    %v901 = vmul.f32 %v882, %v899
    %v902 = vsel %vm414, %v901, 0.0
    %903 = vadd.xlane.f32.xlu0 %v902
    %v904 = vpop.xlane.xlu0 %903
    %v905 = vmul.f32 %v882, %v885
    %v906 = vsel %vm414, %v905, 0.0
    %907 = vadd.xlane.f32.xlu0 %v906
    %v908 = vpop.xlane.xlu0 %907
    %v910 = vrot.slane %v893, 4
    %v912 = vmul.f32 %v890, %v910
    %v913 = vmax.f32 %v912, 1e-16
    %v914 = vrsqrt.pop %v913
    %v915 = vmul.f32 %v914, %v913
    %v916 = vmul.f32 %v915, %v914
    %v917 = vmul.f32 0.5, %v916
    %v918 = vsub.f32 1.5, %v917
    %v919 = vmul.f32 %v914, %v918
    %v920 = vmul.f32 %v913, %v919
    %vm921 = vcmp.eq.f32.partialorder %v913, inf
    %v922 = vsel %vm921, %v913, %v920
    %vm923 = vcmp.eq.f32.partialorder %v913, 0.0
    %v924 = vand.u32 %v913, 2147483648
    %v925 = vsel %vm923, %v924, %v922
    %v926 = vrcp.pop %v925
    %v927 = vmul.f32 %v925, %v926
    %v928 = vsub.f32 1.0, %v927
    %v929 = vmul.f32 %v926, %v928
    %v930 = vadd.f32 %v926, %v929
    %vm931 = vweird.f32 %v925
    %vm932 = vweird.f32 %v926
    %vm933 = vmor %vm931, %vm932
    %v934 = vsel %vm933, %v926, %v930
    %v935 = vand.u32 2147483647, %v925
    %vm936 = vcmp.eq.f32.partialorder %v935, 8.507059e+37
    %v937 = vand.u32 %v925, 2147483648
    %v938 = vor.u32 1.1754944e-38, %v937
    %v939 = vsel %vm936, %v938, %v934
    %v940 = vmul.f32 %v904, %v939
    %v941 = vmul.f32 %v890, %v897
    %v942 = vmax.f32 %v941, 1e-16
    %v943 = vrsqrt.pop %v942
    %v944 = vmul.f32 %v943, %v942
    %v945 = vmul.f32 %v944, %v943
    %v946 = vmul.f32 0.5, %v945
    %v947 = vsub.f32 1.5, %v946
    %v948 = vmul.f32 %v943, %v947
    %v949 = vmul.f32 %v942, %v948
    %vm950 = vcmp.eq.f32.partialorder %v942, inf
    %v951 = vsel %vm950, %v942, %v949
    %vm952 = vcmp.eq.f32.partialorder %v942, 0.0
    %v953 = vand.u32 %v942, 2147483648
    %v954 = vsel %vm952, %v953, %v951
    %v955 = vrcp.pop %v954
    %v956 = vmul.f32 %v954, %v955
    %v957 = vsub.f32 1.0, %v956
    %v958 = vmul.f32 %v955, %v957
    %v959 = vadd.f32 %v955, %v958
    %vm960 = vweird.f32 %v954
    %vm961 = vweird.f32 %v955
    %vm962 = vmor %vm960, %vm961
    %v963 = vsel %vm962, %v955, %v959
    %v964 = vand.u32 2147483647, %v954
    %vm965 = vcmp.eq.f32.partialorder %v964, 8.507059e+37
    %v966 = vand.u32 %v954, 2147483648
    %v967 = vor.u32 1.1754944e-38, %v966
    %v968 = vsel %vm965, %v967, %v963
    %v969 = vmul.f32 %v908, %v968
    %v970 = vmul.f32 %v940, %v504
    %v971 = vmul.f32 %v969, %v504
    %v972 = vmax.f32 %v970, %v971
    %v973 = vsub.f32 %v970, %v972
    %v974 = vmul.f32 %v973, 1.442695
    %v975 = vpow.pop %v974
    %v976 = vsub.f32 %v971, %v972
    %v977 = vmul.f32 %v976, 1.442695
    %v978 = vpow.pop %v977
    %v979 = vadd.f32 %v975, %v978
    %v980 = vlog2.pop %v979
    %v981 = vmul.f32 %v980, 0.6931472
    %v982 = vadd.f32 %v972, %v981
    %v983 = vsub.f32 %v982, %v970
    %v984 = vsel %vm519, %v983, 0.0
    %985 = vadd.xlane.f32.xlu0 %v984
    %v986 = vpop.xlane.xlu0 %985
    %v987 = vrot.slane %v986, 4
    %v988 = vadd.f32 %v986, %v987
    %v989 = vrot.slane %v988, 2
    %v990 = vadd.f32 %v988, %v989
    %v991 = vrot.slane %v990, 1
    %v992 = vadd.f32 %v990, %v991
    %s993 = vtos %v992
    %v994 = vrcp.pop 4.0
    %v995 = vmul.f32 4.0, %v994
    %v996 = vsub.f32 1.0, %v995
    %v997 = vmul.f32 %v994, %v996
    %v998 = vadd.f32 %v994, %v997
    %vm999 = vweird.f32 %v994
    %v1000 = vsel %vm999, %v994, %v998
    %s1001 = vtos %v1000
    %s1002 = smul.f32 %s993, %s1001
    %v1003 = vsub.f32 %v904, %v908
    %v1004 = vsub.f32 0.0, %v1003
    %v1005 = vmul.f32 %v1004, 1.442695
    %v1006 = vpow.pop %v1005
    %v1007 = vadd.f32 %v1006, 1.0
    %v1008 = vrcp.pop %v1007
    %v1009 = vmul.f32 %v1007, %v1008
    %v1010 = vsub.f32 1.0, %v1009
    %v1011 = vmul.f32 %v1008, %v1010
    %v1012 = vadd.f32 %v1008, %v1011
    %vm1013 = vweird.f32 %v1007
    %vm1014 = vweird.f32 %v1008
    %vm1015 = vmor %vm1013, %vm1014
    %v1016 = vsel %vm1015, %v1008, %v1012
    %v1017 = vand.u32 2147483647, %v1007
    %vm1018 = vcmp.eq.f32.partialorder %v1017, 8.507059e+37
    %v1019 = vand.u32 %v1007, 2147483648
    %v1020 = vor.u32 1.1754944e-38, %v1019
    %v1021 = vsel %vm1018, %v1020, %v1016
    %v1022 = vmul.f32 1.0, %v1021
    %v1023 = vadd.f32 %v1022, 1e-10
    %v1024 = vlog2.pop %v1023
    %v1025 = vmul.f32 %v1024, 0.6931472
    %v1026 = vsel %vm519, %v1025, 0.0
    %1027 = vadd.xlane.f32.xlu0 %v1026
    %v1028 = vpop.xlane.xlu0 %1027
    %v1029 = vrot.slane %v1028, 4
    %v1030 = vadd.f32 %v1028, %v1029
    %v1031 = vrot.slane %v1030, 2
    %v1032 = vadd.f32 %v1030, %v1031
    %v1033 = vrot.slane %v1032, 1
    %v1034 = vadd.f32 %v1032, %v1033
    %s1035 = vtos %v1034
    %v1036 = vrcp.pop 4.0
    %v1037 = vmul.f32 4.0, %v1036
    %v1038 = vsub.f32 1.0, %v1037
    %v1039 = vmul.f32 %v1036, %v1038
    %v1040 = vadd.f32 %v1036, %v1039
    %vm1041 = vweird.f32 %v1036
    %v1042 = vsel %vm1041, %v1036, %v1040
    %s1043 = vtos %v1042
    %s1044 = smul.f32 %s1035, %s1043
    %s1045 = ssub.f32 0.0, %s1044
    %s1046 = sld [smem:[#allocation2 + $0x1]]
    %s1047 = smul.f32 %s1046, %s1045
    %s1048 = sadd.f32 %s585, %s1047
    %s1049 = sadd.f32 %s1048, %s1002
    %v1050 = vstv %s1049
    %vm1051 = vcmask 0
    %1052 = vst.msk [vmem:[#allocation9] sm:$0x1] %vm1051, %v1050
    // Predicated region
    $region38: #{tpu_custom_call.1} parent=1 // pred_check
      _
    $region39: #{tpu_custom_call.1} parent=1 // pred_check_branch
      %1054 = sbr.rel (0) target = $region41
    $region40: #{tpu_custom_call.1} parent=1 // pred_region
      %1056 = vsyncadd [#allocation4], 0
      %s1058 = sshll.u32 [#allocation9], 4
      %s1059 = int_to_ptr.vmem [resolvable:$true] %s1058
      %s1060 = sshll.u32 %s6, 4
      %s1061 = int_to_ptr.hbm [resolvable:$true] %s1060
      %1063 = dma.vmem_to_hbm [thread:$0]  %s1059, 16, %s1061, [#allocation4]
    $region41: #{tpu_custom_call.1} parent=1 // pred_fallthru
      _
    // Predicated region
    $region42: #{tpu_custom_call.1} parent=1 // pred_check
      _
    $region43: #{tpu_custom_call.1} parent=1 // pred_check_branch
      %1065 = sbr.rel (0) target = $region45
    $region44: #{tpu_custom_call.1} parent=1 // pred_region
      %1067 = vsyncadd [#allocation11], 0
      %s1068 = sshll.u32 [#allocation10], 4
      %s1069 = int_to_ptr.vmem [resolvable:$true] %s1068
      %s1070 = sshll.u32 %s7, 4
      %s1071 = int_to_ptr.hbm [resolvable:$true] %s1070
      %1076 = dma.vmem_to_hbm [thread:$0]  %s1069, 768, %s1071, [#allocation11], 128, 128, 8
    $region45: #{tpu_custom_call.1} parent=1 // pred_fallthru
      _
    // Predicated region
    $region46: #{tpu_custom_call.1} parent=1 // pred_check
      _
    $region47: #{tpu_custom_call.1} parent=1 // pred_check_branch
      %1078 = sbr.rel (0) target = $region49
    $region48: #{tpu_custom_call.1} parent=1 // pred_region
      %1080 = dma.done [#allocation4], 16
    $region49: #{tpu_custom_call.1} parent=1 // pred_fallthru
      _
    // Predicated region
    $region50: #{tpu_custom_call.1} parent=1 // pred_check
      _
    $region51: #{tpu_custom_call.1} parent=1 // pred_check_branch
      %1082 = sbr.rel (0) target = $region53
    $region52: #{tpu_custom_call.1} parent=1 // pred_region
      %1084 = dma.done [#allocation11], 768
    $region53: #{tpu_custom_call.1} parent=1 // pred_fallthru
      _
    %1085 = vsyncpa [#allocation3], 1
    %1086 = vsyncpa [#allocation8], 1
    %1087 = vsyncpa [#allocation4], 1
    %1088 = vsyncpa [#allocation11], 1
    %1089 = vsyncpa [#allocation5], 1

</llo_original>
